<compile_context>
chip_gen: v6e
topology: v6e:2x2x1
jax: 0.10.0
libtpu: 0.0.40
codegen_flags: <defaults>
</compile_context>

<pallas_src>
import functools
import math

import jax
import jax.numpy as jnp
from jax import lax
from jax.experimental import pallas as pl
from jax.experimental.pallas import tpu as pltpu
import numpy as np


def _round_up(x, m):
    return (x + m - 1) // m * m


def _gelu(h, approx):
    if approx:
        # tanh-approx GELU: transcendental lands on the EUP slot (cheaper on
        # v6e/v7x) but differs slightly from torch.nn.GELU() default numerics.
        c = math.sqrt(2.0 / math.pi)
        return 0.5 * h * (1.0 + jnp.tanh(c * (h + 0.044715 * h * h * h)))
    # Exact erf GELU — matches torch.nn.GELU() default.
    return 0.5 * h * (1.0 + lax.erf(h * (1.0 / math.sqrt(2.0))))


def _layernorm_affine(y, g, b, true_dim, padded_dim):
    """LayerNorm over the feature axis (eps=1e-5) + affine.

    When the feature axis is lane-padded, mean/var are computed over the true
    feature count with a lane mask; when dim % 128 == 0 (typical ViT dims)
    the mask and iota are statically skipped.
    """
    if true_dim == padded_dim:
        mean = jnp.mean(y, axis=-1, keepdims=True)
        diff = y - mean
        var = jnp.mean(diff * diff, axis=-1, keepdims=True)
    else:
        col = lax.broadcasted_iota(jnp.int32, y.shape, dimension=1)
        mask = (col < true_dim).astype(jnp.float32)
        inv_d = 1.0 / float(true_dim)
        mean = jnp.sum(y * mask, axis=-1, keepdims=True) * inv_d
        diff = (y - mean) * mask
        var = jnp.sum(diff * diff, axis=-1, keepdims=True) * inv_d
    y_norm = (y - mean) * lax.rsqrt(var + 1e-5)
    return y_norm * g + b


# ---------------------------------------------------------------------------
# Kernels
# ---------------------------------------------------------------------------
def _mlp_resident_kernel(x_ref, w1_ref, b1_ref, w2_ref, b2_ref, g_ref,
                         beta_ref, o_ref, *, true_dim, padded_dim,
                         gelu_approx):
    """Weight-resident path: grid = (row_tiles,). W1/W2 DMA'd once."""
    x = x_ref[...].astype(jnp.bfloat16)
    h = jnp.dot(x, w1_ref[...],
                preferred_element_type=jnp.float32) + b1_ref[...]
    h = _gelu(h, gelu_approx)
    # TODO(synk): dropout omitted (eval / inference semantics => identity).
    y = jnp.dot(h.astype(jnp.bfloat16), w2_ref[...],
                preferred_element_type=jnp.float32) + b2_ref[...]
    o_ref[...] = _layernorm_affine(y, g_ref[...], beta_ref[...],
                                   true_dim, padded_dim).astype(o_ref.dtype)


def _mlp_ktiled_kernel(x_ref, w1_ref, b1_ref, w2_ref, b2_ref, g_ref, beta_ref,
                       o_ref, acc_ref, *, true_dim, padded_dim, gelu_approx):
    """Fallback: grid = (row_tiles, k_tiles over mlp_dim), f32 accumulator."""
    k = pl.program_id(1)

    x = x_ref[...].astype(jnp.bfloat16)
    h = jnp.dot(x, w1_ref[...],
                preferred_element_type=jnp.float32) + b1_ref[...]
    h = _gelu(h, gelu_approx)
    # TODO(synk): dropout omitted (eval / inference semantics => identity).
    p = jnp.dot(h.astype(jnp.bfloat16), w2_ref[...],
                preferred_element_type=jnp.float32)

    @pl.when(k == 0)
    def _():
        acc_ref[...] = p            # direct write: no zero-init + RMW pass

    @pl.when(k > 0)
    def _():
        acc_ref[...] += p

    @pl.when(k == pl.num_programs(1) - 1)
    def _():
        y = acc_ref[...] + b2_ref[...]
        o_ref[...] = _layernorm_affine(
            y, g_ref[...], beta_ref[...], true_dim, padded_dim
        ).astype(o_ref.dtype)


# ---------------------------------------------------------------------------
# Host-side wrappers
# ---------------------------------------------------------------------------
def prepare_mlp_params(w1, b1, w2, b2, gamma, beta):
    """Pad to lane multiples and cast MXU operands to bf16 ONCE.

    Hoisted out of the per-call forward path so weights are not re-read /
    re-written through HBM on every call.
    """
    dim, mlp_dim = w1.shape
    dim_p = _round_up(dim, 128)
    mlp_p = _round_up(mlp_dim, 128)
    w1_p = jnp.zeros((dim_p, mlp_p), jnp.bfloat16).at[:dim, :mlp_dim].set(
        jnp.asarray(w1, jnp.bfloat16))
    w2_p = jnp.zeros((mlp_p, dim_p), jnp.bfloat16).at[:mlp_dim, :dim].set(
        jnp.asarray(w2, jnp.bfloat16))
    b1_p = jnp.zeros((1, mlp_p), jnp.float32).at[:, :mlp_dim].set(
        jnp.asarray(b1, jnp.float32)[None, :])
    b2_p = jnp.zeros((1, dim_p), jnp.float32).at[:, :dim].set(
        jnp.asarray(b2, jnp.float32)[None, :])
    g_p = jnp.zeros((1, dim_p), jnp.float32).at[:, :dim].set(
        jnp.asarray(gamma, jnp.float32)[None, :])
    beta_p = jnp.zeros((1, dim_p), jnp.float32).at[:, :dim].set(
        jnp.asarray(beta, jnp.float32)[None, :])
    return w1_p, b1_p, w2_p, b2_p, g_p, beta_p


@functools.partial(
    jax.jit,
    static_argnames=("tile_m", "tile_k", "gelu_approx", "out_dtype",
                     "vmem_budget"))
def mlp_forward(x, w1_p, b1_p, w2_p, b2_p, g_p, beta_p, *,
                tile_m=512, tile_k=512, gelu_approx=False, out_dtype=None,
                vmem_budget=44 * 1024 * 1024):
    """x: (..., dim).  Returns (..., dim).

    vmem_budget is the per-TensorCore VMEM budget used to decide weight
    residency; the default (44 MB) is safe on v7x (64 MiB/TC).  On v5e/v6e
    (128 MiB) it can be raised to keep larger weights resident.
    """
    *lead, dim = x.shape
    M = int(math.prod(lead)) if lead else 1
    dim_p, mlp_p = w1_p.shape
    out_dtype = x.dtype if out_dtype is None else np.dtype(out_dtype)

    # ---- row tiling ------------------------------------------------------
    tm = max(8, min(tile_m, _round_up(M, 8)))
    m_p = _round_up(M, tm)

    # ---- x: skip pad/cast copies when already aligned ----------------------
    xr = x.reshape(M, dim)
    if dim == dim_p and m_p == M:
        x2 = xr                                    # bf16 cast happens in-kernel
    else:
        x2 = jnp.zeros((m_p, dim_p), jnp.bfloat16).at[:M, :dim].set(
            xr.astype(jnp.bfloat16))

    itemsize_x = np.dtype(x2.dtype).itemsize
    itemsize_o = np.dtype(out_dtype).itemsize
    w_bytes = 2 * dim_p * mlp_p * 2                # W1 + W2, bf16

    # ---- weight-resident footprint (conservative: weights counted twice for
    #      the pipeline's second buffer even though constant-index blocks are
    #      only DMA'd once) -------------------------------------------------
    resident_bytes = (
        2 * w_bytes
        + 2 * tm * dim_p * itemsize_x              # x tile, double-buffered
        + 2 * tm * dim_p * itemsize_o              # out tile, double-buffered
        + tm * mlp_p * 6                           # h intermediate f32 + bf16
        + 4 * tm * dim_p * 4                       # LayerNorm temporaries
        + (2 * mlp_p + 6 * dim_p) * 4              # biases / affine params
        + (1 << 20))                               # slack
    resident = resident_bytes <= vmem_budget

    if resident:
        kernel = functools.partial(_mlp_resident_kernel, true_dim=dim,
                                   padded_dim=dim_p, gelu_approx=gelu_approx)
        grid = (m_p // tm,)
        in_specs = [
            pl.BlockSpec((tm, dim_p), lambda i: (i, 0)),      # x rows
            pl.BlockSpec((dim_p, mlp_p), lambda i: (0, 0)),   # W1 (resident)
            pl.BlockSpec((1, mlp_p), lambda i: (0, 0)),       # b1
            pl.BlockSpec((mlp_p, dim_p), lambda i: (0, 0)),   # W2 (resident)
            pl.BlockSpec((1, dim_p), lambda i: (0, 0)),       # b2
            pl.BlockSpec((1, dim_p), lambda i: (0, 0)),       # gamma
            pl.BlockSpec((1, dim_p), lambda i: (0, 0)),       # beta
        ]
        out_specs = pl.BlockSpec((tm, dim_p), lambda i: (i, 0))
        scratch_shapes = []
        dim_sems = ("parallel",)
        needed = resident_bytes
        weight_stream = w_bytes                    # weights read once
    else:
        # tile_k: 128-multiple that divides round_up(mlp_dim, 128) exactly
        # (no over-padding of the mlp axis).
        tk = min(_round_up(tile_k, 128), mlp_p)
        while mlp_p % tk:
            tk -= 128
        kernel = functools.partial(_mlp_ktiled_kernel, true_dim=dim,
                                   padded_dim=dim_p, gelu_approx=gelu_approx)
        grid = (m_p // tm, mlp_p // tk)
        in_specs = [
            pl.BlockSpec((tm, dim_p), lambda i, k: (i, 0)),   # x rows
            pl.BlockSpec((dim_p, tk), lambda i, k: (0, k)),   # W1 slab
            pl.BlockSpec((1, tk), lambda i, k: (0, k)),       # b1 slab
            pl.BlockSpec((tk, dim_p), lambda i, k: (k, 0)),   # W2 slab
            pl.BlockSpec((1, dim_p), lambda i, k: (0, 0)),    # b2
            pl.BlockSpec((1, dim_p), lambda i, k: (0, 0)),    # gamma
            pl.BlockSpec((1, dim_p), lambda i, k: (0, 0)),    # beta
        ]
        out_specs = pl.BlockSpec((tm, dim_p), lambda i, k: (i, 0))
        scratch_shapes = [pltpu.VMEM((tm, dim_p), jnp.float32)]
        dim_sems = ("parallel", "arbitrary")
        needed = (
            2 * tm * dim_p * itemsize_x
            + 2 * tm * dim_p * itemsize_o
            + 2 * 2 * (dim_p * tk + tk * dim_p)    # bf16 weight slabs, 2 bufs
            + tm * dim_p * 4                       # f32 accumulator scratch
            + tm * tk * 6                          # h intermediates
            + 4 * tm * dim_p * 4                   # LN temporaries
            + (2 * tk + 6 * dim_p) * 4
            + (1 << 20))
        weight_stream = w_bytes * (m_p // tm)      # weights re-streamed / tile

    # Leave headroom below the v7x 64 MiB/TC physical VMEM (never flat 64 MB).
    vmem_limit = int(min(max(int(needed * 1.25), 32 * 1024 * 1024),
                         max(vmem_budget + 12 * 1024 * 1024,
                             16 * 1024 * 1024)))

    cost = pl.CostEstimate(
        flops=4 * m_p * dim_p * mlp_p,             # two matmuls
        transcendentals=m_p * mlp_p,               # GELU per element
        bytes_accessed=int(m_p * dim_p * (itemsize_x + itemsize_o)
                           + weight_stream + (mlp_p + 3 * dim_p) * 4),
    )

    out = pl.pallas_call(
        kernel,
        out_shape=jax.ShapeDtypeStruct((m_p, dim_p), out_dtype),
        grid_spec=pltpu.PrefetchScalarGridSpec(
            num_scalar_prefetch=0,
            grid=grid,
            in_specs=in_specs,
            out_specs=out_specs,
            scratch_shapes=scratch_shapes,
        ),
        compiler_params=pltpu.CompilerParams(
            dimension_semantics=dim_sems,
            vmem_limit_bytes=vmem_limit,
        ),
        cost_estimate=cost,
    )(x2, w1_p, b1_p, w2_p, b2_p, g_p, beta_p)

    return out[:M, :dim].reshape(*lead, dim)


def _reference(x, w1, b1, w2, b2, gamma, beta):
    h = x.astype(jnp.float32) @ w1 + b1
    h = 0.5 * h * (1.0 + lax.erf(h / jnp.sqrt(2.0)))
    y = h @ w2 + b2
    mean = jnp.mean(y, axis=-1, keepdims=True)
    var = jnp.mean((y - mean) ** 2, axis=-1, keepdims=True)
    yn = (y - mean) * lax.rsqrt(var + 1e-5)
    return yn * gamma + beta


if __name__ == "__main__":
    # Small ViT-like shapes: batch=2, seq=8, dim=32, mlp_dim=64
    B, N, dim, mlp_dim = 2, 8, 32, 64

    key = jax.random.PRNGKey(0)
    kx, k1, k2, k3, k4 = jax.random.split(key, 5)

    x = jax.random.normal(kx, (B, N, dim), dtype=jnp.float32)

    # Deterministic "Linear"-style init (uniform in +-1/sqrt(fan_in))
    bound1 = 1.0 / math.sqrt(dim)
    bound2 = 1.0 / math.sqrt(mlp_dim)
    w1 = jax.random.uniform(k1, (dim, mlp_dim), jnp.float32, -bound1, bound1)
    b1 = jax.random.uniform(k2, (mlp_dim,), jnp.float32, -bound1, bound1)
    w2 = jax.random.uniform(k3, (mlp_dim, dim), jnp.float32, -bound2, bound2)
    b2 = jax.random.uniform(k4, (dim,), jnp.float32, -bound2, bound2)
    gamma = jnp.ones((dim,), jnp.float32)   # LayerNorm weight
    beta = jnp.zeros((dim,), jnp.float32)   # LayerNorm bias

    # Pad / cast weights once (hoisted out of the per-call path).
    params = prepare_mlp_params(w1, b1, w2, b2, gamma, beta)

    ref = _reference(x, w1, b1, w2, b2, gamma, beta)

    # Weight-resident fast path (default budget).
    out = jax.block_until_ready(mlp_forward(x, *params))
    # bf16 MXU operands with f32 accumulation -> compare at bf16 tolerance
    # (intentional precision trade-off vs the f32 PyTorch reference).
    np.testing.assert_allclose(np.asarray(out), np.asarray(ref),
                               rtol=2e-2, atol=2e-2)

    # Also exercise the k-tiled fallback path (forced by a tiny VMEM budget).
    out_kt = jax.block_until_ready(mlp_forward(x, *params, vmem_budget=1))
    np.testing.assert_allclose(np.asarray(out_kt), np.asarray(ref),
                               rtol=2e-2, atol=2e-2)

    print("KERNEL_OK")
</pallas_src>

<mosaic_0001>
module attributes {stable_mosaic.version = 11 : i64} {
  func.func @_mlp_resident_kernel(%arg0: i32, %arg1: memref<16x128xbf16, #tpu.memory_space<vmem>>, %arg2: memref<128x128xbf16, #tpu.memory_space<vmem>>, %arg3: memref<1x128xf32, #tpu.memory_space<vmem>>, %arg4: memref<128x128xbf16, #tpu.memory_space<vmem>>, %arg5: memref<1x128xf32, #tpu.memory_space<vmem>>, %arg6: memref<1x128xf32, #tpu.memory_space<vmem>>, %arg7: memref<1x128xf32, #tpu.memory_space<vmem>>, %arg8: memref<16x128xf32, #tpu.memory_space<vmem>>) attributes {dimension_semantics = [#tpu.dimension_semantics<parallel>], iteration_bounds = array<i64: 1>, scalar_prefetch = 0 : i64, scratch_operands = 0 : i64, tpu.core_type = #tpu.core_type<tc>, window_params = [{transform_indices = @transform_0, window_bounds = array<i64: 16, 128>}, {pipeline_mode = #tpu.pipeline_mode<synchronous>, transform_indices = @transform_1, window_bounds = array<i64: 128, 128>}, {pipeline_mode = #tpu.pipeline_mode<synchronous>, transform_indices = @transform_2, window_bounds = array<i64: 1, 128>}, {pipeline_mode = #tpu.pipeline_mode<synchronous>, transform_indices = @transform_3, window_bounds = array<i64: 128, 128>}, {pipeline_mode = #tpu.pipeline_mode<synchronous>, transform_indices = @transform_4, window_bounds = array<i64: 1, 128>}, {pipeline_mode = #tpu.pipeline_mode<synchronous>, transform_indices = @transform_5, window_bounds = array<i64: 1, 128>}, {pipeline_mode = #tpu.pipeline_mode<synchronous>, transform_indices = @transform_6, window_bounds = array<i64: 1, 128>}, {transform_indices = @transform_7, window_bounds = array<i64: 16, 128>}]} {
    %c0 = arith.constant 0 : index
    %c0_0 = arith.constant 0 : index
    %0 = vector.load %arg1[%c0, %c0_0] : memref<16x128xbf16, #tpu.memory_space<vmem>>, vector<16x128xbf16>
    %c0_1 = arith.constant 0 : index
    %c0_2 = arith.constant 0 : index
    %1 = vector.load %arg2[%c0_1, %c0_2] : memref<128x128xbf16, #tpu.memory_space<vmem>>, vector<128x128xbf16>
    %cst = arith.constant dense<0.000000e+00> : vector<16x128xf32>
    %2 = tpu.matmul %0, %1, %cst {dimension_numbers = #tpu.dot_dimension_numbers<[1], [0], [0], [1], [0, 0, 1, 1], [], []>} : vector<16x128xbf16>, vector<128x128xbf16>, vector<16x128xf32> -> vector<16x128xf32>
    %c0_3 = arith.constant 0 : index
    %c0_4 = arith.constant 0 : index
    %3 = vector.load %arg3[%c0_3, %c0_4] : memref<1x128xf32, #tpu.memory_space<vmem>>, vector<1x128xf32>
    %4 = vector.broadcast %3 : vector<1x128xf32> to vector<16x128xf32>
    %5 = arith.addf %2, %4 : vector<16x128xf32>
    %cst_5 = arith.constant 5.000000e-01 : f32
    %6 = vector.broadcast %cst_5 : f32 to vector<16x128xf32>
    %7 = arith.mulf %6, %5 : vector<16x128xf32>
    %cst_6 = arith.constant 0.707106769 : f32
    %8 = vector.broadcast %cst_6 : f32 to vector<16x128xf32>
    %9 = arith.mulf %5, %8 : vector<16x128xf32>
    %10 = math.erf %9 : vector<16x128xf32>
    %cst_7 = arith.constant 1.000000e+00 : f32
    %11 = vector.broadcast %cst_7 : f32 to vector<16x128xf32>
    %12 = arith.addf %11, %10 : vector<16x128xf32>
    %13 = arith.mulf %7, %12 : vector<16x128xf32>
    %14 = arith.truncf %13 : vector<16x128xf32> to vector<16x128xbf16>
    %c0_8 = arith.constant 0 : index
    %c0_9 = arith.constant 0 : index
    %15 = vector.load %arg4[%c0_8, %c0_9] : memref<128x128xbf16, #tpu.memory_space<vmem>>, vector<128x128xbf16>
    %cst_10 = arith.constant dense<0.000000e+00> : vector<16x128xf32>
    %16 = tpu.matmul %14, %15, %cst_10 {dimension_numbers = #tpu.dot_dimension_numbers<[1], [0], [0], [1], [0, 0, 1, 1], [], []>} : vector<16x128xbf16>, vector<128x128xbf16>, vector<16x128xf32> -> vector<16x128xf32>
    %c0_11 = arith.constant 0 : index
    %c0_12 = arith.constant 0 : index
    %17 = vector.load %arg5[%c0_11, %c0_12] : memref<1x128xf32, #tpu.memory_space<vmem>>, vector<1x128xf32>
    %18 = vector.broadcast %17 : vector<1x128xf32> to vector<16x128xf32>
    %19 = arith.addf %16, %18 : vector<16x128xf32>
    %c0_13 = arith.constant 0 : index
    %c0_14 = arith.constant 0 : index
    %20 = vector.load %arg6[%c0_13, %c0_14] : memref<1x128xf32, #tpu.memory_space<vmem>>, vector<1x128xf32>
    %c0_15 = arith.constant 0 : index
    %c0_16 = arith.constant 0 : index
    %21 = vector.load %arg7[%c0_15, %c0_16] : memref<1x128xf32, #tpu.memory_space<vmem>>, vector<1x128xf32>
    %22 = tpu.iota {dimensions = array<i32: 1>} : vector<16x128xi32>
    %c32_i32 = arith.constant 32 : i32
    %23 = vector.broadcast %c32_i32 : i32 to vector<16x128xi32>
    %24 = arith.cmpi slt, %22, %23 : vector<16x128xi32>
    %25 = arith.extui %24 : vector<16x128xi1> to vector<16x128xi32>
    %26 = arith.sitofp %25 : vector<16x128xi32> to vector<16x128xf32>
    %27 = arith.mulf %19, %26 : vector<16x128xf32>
    %cst_17 = arith.constant dense<0.000000e+00> : vector<16xf32>
    %28 = vector.multi_reduction <add>, %27, %cst_17 [1] : vector<16x128xf32> to vector<16xf32>
    %29 = vector.shape_cast %28 : vector<16xf32> to vector<16x1xf32>
    %cst_18 = arith.constant 3.125000e-02 : f32
    %30 = vector.broadcast %cst_18 : f32 to vector<16x1xf32>
    %31 = arith.mulf %29, %30 : vector<16x1xf32>
    %32 = vector.broadcast %31 : vector<16x1xf32> to vector<16x128xf32>
    %33 = arith.subf %19, %32 : vector<16x128xf32>
    %34 = arith.mulf %33, %26 : vector<16x128xf32>
    %35 = arith.mulf %34, %34 : vector<16x128xf32>
    %cst_19 = arith.constant dense<0.000000e+00> : vector<16xf32>
    %36 = vector.multi_reduction <add>, %35, %cst_19 [1] : vector<16x128xf32> to vector<16xf32>
    %37 = vector.shape_cast %36 : vector<16xf32> to vector<16x1xf32>
    %cst_20 = arith.constant 3.125000e-02 : f32
    %38 = vector.broadcast %cst_20 : f32 to vector<16x1xf32>
    %39 = arith.mulf %37, %38 : vector<16x1xf32>
    %40 = vector.broadcast %31 : vector<16x1xf32> to vector<16x128xf32>
    %41 = arith.subf %19, %40 : vector<16x128xf32>
    %cst_21 = arith.constant 9.99999974E-6 : f32
    %42 = vector.broadcast %cst_21 : f32 to vector<16x1xf32>
    %43 = arith.addf %39, %42 : vector<16x1xf32>
    %44 = math.rsqrt %43 : vector<16x1xf32>
    %45 = vector.broadcast %44 : vector<16x1xf32> to vector<16x128xf32>
    %46 = arith.mulf %41, %45 : vector<16x128xf32>
    %47 = vector.broadcast %20 : vector<1x128xf32> to vector<16x128xf32>
    %48 = arith.mulf %46, %47 : vector<16x128xf32>
    %49 = vector.broadcast %21 : vector<1x128xf32> to vector<16x128xf32>
    %50 = arith.addf %48, %49 : vector<16x128xf32>
    %c0_22 = arith.constant 0 : index
    %c0_23 = arith.constant 0 : index
    %51 = vector.load %arg8[%c0_22, %c0_23] : memref<16x128xf32, #tpu.memory_space<vmem>>, vector<16x128xf32>
    tpu.vector_store %arg8[%c0_22, %c0_23], %50 {strides = array<i32>} : memref<16x128xf32, #tpu.memory_space<vmem>>, vector<16x128xf32>,
    return
  }
  func.func @transform_0(%arg0: i32) -> (i32, i32) {
    %c0_i32 = arith.constant 0 : i32
    %c0_i32_0 = arith.constant 0 : i32
    return %arg0, %c0_i32 : i32, i32
  }
  func.func @transform_1(%arg0: i32) -> (i32, i32) {
    %c0_i32 = arith.constant 0 : i32
    %c0_i32_0 = arith.constant 0 : i32
    %c0_i32_1 = arith.constant 0 : i32
    return %c0_i32, %c0_i32_0 : i32, i32
  }
  func.func @transform_2(%arg0: i32) -> (i32, i32) {
    %c0_i32 = arith.constant 0 : i32
    %c0_i32_0 = arith.constant 0 : i32
    %c0_i32_1 = arith.constant 0 : i32
    return %c0_i32, %c0_i32_0 : i32, i32
  }
  func.func @transform_3(%arg0: i32) -> (i32, i32) {
    %c0_i32 = arith.constant 0 : i32
    %c0_i32_0 = arith.constant 0 : i32
    %c0_i32_1 = arith.constant 0 : i32
    return %c0_i32, %c0_i32_0 : i32, i32
  }
  func.func @transform_4(%arg0: i32) -> (i32, i32) {
    %c0_i32 = arith.constant 0 : i32
    %c0_i32_0 = arith.constant 0 : i32
    %c0_i32_1 = arith.constant 0 : i32
    return %c0_i32, %c0_i32_0 : i32, i32
  }
  func.func @transform_5(%arg0: i32) -> (i32, i32) {
    %c0_i32 = arith.constant 0 : i32
    %c0_i32_0 = arith.constant 0 : i32
    %c0_i32_1 = arith.constant 0 : i32
    return %c0_i32, %c0_i32_0 : i32, i32
  }
  func.func @transform_6(%arg0: i32) -> (i32, i32) {
    %c0_i32 = arith.constant 0 : i32
    %c0_i32_0 = arith.constant 0 : i32
    %c0_i32_1 = arith.constant 0 : i32
    return %c0_i32, %c0_i32_0 : i32, i32
  }
  func.func @transform_7(%arg0: i32) -> (i32, i32) {
    %c0_i32 = arith.constant 0 : i32
    %c0_i32_0 = arith.constant 0 : i32
    return %arg0, %c0_i32 : i32, i32
  }
}

</mosaic_0001>

<llo_original>
// kernel: mlp_forward.1
$region0: #{mlp_forward.1}
  #allocation0 [shape = 'u32[]', space=smem, size = 0x4, offset = 0x4, fixed_abs, tag = 'smem constant byte address 0x4 - core index']
  #allocation1 [shape = 'u32[144,128]{1,0:T(1,128)}', space=vmem, size = 0x12000, scoped, tag = 'internal scratch']
  %s0 = inlined_call_operand.vmem [shape: bf16[16,128], index: 0, kind: input, shape index: {}]
  %s1 = inlined_call_operand.hbm [shape: bf16[128,128], index: 1, kind: input, shape index: {}]
  %s2 = inlined_call_operand.vmem [shape: f32[1,128], index: 2, kind: input, shape index: {}]
  %s3 = inlined_call_operand.hbm [shape: bf16[128,128], index: 3, kind: input, shape index: {}]
  %s4 = inlined_call_operand.vmem [shape: f32[1,128], index: 4, kind: input, shape index: {}]
  %s5 = inlined_call_operand.vmem [shape: f32[1,128], index: 5, kind: input, shape index: {}]
  %s6 = inlined_call_operand.vmem [shape: f32[1,128], index: 6, kind: input, shape index: {}]
  %s7 = inlined_call_operand.vmem [shape: f32[16,128], index: 7, kind: output, shape index: {}]
  %s8 = sld [smem:[#allocation0]]
  $region46: #{mlp_forward.1} parent=0
    _
  %s10 = ssub.s32 1, %s8
  %s11 = scalar_select 0, %s10, %s8
  $region1: #{mlp_forward.1} parent=0
    #allocation2 [shape = 'u8[32768]{0}', space=vmem, size = 0x8000, scoped, tag = 'input window, operand 1, single buffered']
    #allocation3 [shape = 's32[1]{0}', space=sflag, size = 0x4, scoped, tag = 'scoped memory for mlp_forward.1']
    #allocation4 [shape = 'u8[32768]{0}', space=vmem, size = 0x8000, scoped, tag = 'input window, operand 3, single buffered']
    #allocation5 [shape = 's32[1]{0}', space=sflag, size = 0x4, scoped, tag = 'scoped memory for mlp_forward.1']
    %12 = vsyncpa [#allocation3], 0
    %13 = vsyncpa [#allocation5], 0
    // Predicated region
    $region2: #{mlp_forward.1} parent=1 // pred_check
      _
    $region3: #{mlp_forward.1} parent=1 // pred_check_branch
      %15 = sbr.rel (0) target = $region5
    $region4: #{mlp_forward.1} parent=1 // pred_region
      _
    $region5: #{mlp_forward.1} parent=1 // pred_fallthru
      _
    // Predicated region
    $region6: #{mlp_forward.1} parent=1 // pred_check
      _
    $region7: #{mlp_forward.1} parent=1 // pred_check_branch
      %17 = sbr.rel (0) target = $region9
    $region8: #{mlp_forward.1} parent=1 // pred_region
      %s19 = ssub.s32 1024, 1024
      %20 = vsyncadd [#allocation3], %s19
      %s21 = sshll.u32 [#allocation2], 4
      %s22 = int_to_ptr.vmem [resolvable:$true] %s21
      %27 = dma.hbm_to_vmem [thread:$0]  %s1, 1024, %s22, [#allocation3], 64, 64, 4
    $region9: #{mlp_forward.1} parent=1 // pred_fallthru
      _
    // Predicated region
    $region10: #{mlp_forward.1} parent=1 // pred_check
      _
    $region11: #{mlp_forward.1} parent=1 // pred_check_branch
      %29 = sbr.rel (0) target = $region13
    $region12: #{mlp_forward.1} parent=1 // pred_region
      _
    $region13: #{mlp_forward.1} parent=1 // pred_fallthru
      _
    // Predicated region
    $region14: #{mlp_forward.1} parent=1 // pred_check
      _
    $region15: #{mlp_forward.1} parent=1 // pred_check_branch
      %31 = sbr.rel (0) target = $region17
    $region16: #{mlp_forward.1} parent=1 // pred_region
      %s33 = ssub.s32 1024, 1024
      %34 = vsyncadd [#allocation5], %s33
      %s35 = sshll.u32 [#allocation4], 4
      %s36 = int_to_ptr.vmem [resolvable:$true] %s35
      %41 = dma.hbm_to_vmem [thread:$0]  %s3, 1024, %s36, [#allocation5], 64, 64, 4
    $region17: #{mlp_forward.1} parent=1 // pred_fallthru
      _
    // Predicated region
    $region18: #{mlp_forward.1} parent=1 // pred_check
      _
    $region19: #{mlp_forward.1} parent=1 // pred_check_branch
      %43 = sbr.rel (0) target = $region21
    $region20: #{mlp_forward.1} parent=1 // pred_region
      _
    $region21: #{mlp_forward.1} parent=1 // pred_fallthru
      _
    // Predicated region
    $region22: #{mlp_forward.1} parent=1 // pred_check
      _
    $region23: #{mlp_forward.1} parent=1 // pred_check_branch
      %45 = sbr.rel (0) target = $region25
    $region24: #{mlp_forward.1} parent=1 // pred_region
      _
    $region25: #{mlp_forward.1} parent=1 // pred_fallthru
      _
    // Predicated region
    $region26: #{mlp_forward.1} parent=1 // pred_check
      _
    $region27: #{mlp_forward.1} parent=1 // pred_check_branch
      %47 = sbr.rel (0) target = $region29
    $region28: #{mlp_forward.1} parent=1 // pred_region
      _
    $region29: #{mlp_forward.1} parent=1 // pred_fallthru
      _
    // Predicated region
    $region30: #{mlp_forward.1} parent=1 // pred_check
      _
    $region31: #{mlp_forward.1} parent=1 // pred_check_branch
      %49 = sbr.rel (0) target = $region33
    $region32: #{mlp_forward.1} parent=1 // pred_region
      %50 = dma.done [#allocation3], 1024
    $region33: #{mlp_forward.1} parent=1 // pred_fallthru
      _
    // Predicated region
    $region34: #{mlp_forward.1} parent=1 // pred_check
      _
    $region35: #{mlp_forward.1} parent=1 // pred_check_branch
      %52 = sbr.rel (0) target = $region37
    $region36: #{mlp_forward.1} parent=1 // pred_region
      %53 = dma.done [#allocation5], 1024
    $region37: #{mlp_forward.1} parent=1 // pred_fallthru
      _
    %v55 = vld [vmem:[%s0] sm:$0xf]
    %v56 = vld [vmem:[%s0 + $0x4] sm:$0xf]
    %v57 = vld [vmem:[#allocation2] sm:$0xf]
    %v58 = vld [vmem:[#allocation2 + $0x4] sm:$0xf]
    %v59 = vld [vmem:[#allocation2 + $0x8] sm:$0xf]
    %v60 = vld [vmem:[#allocation2 + $0xc] sm:$0xf]
    %v61 = vld [vmem:[#allocation2 + $0x10] sm:$0xf]
    %v62 = vld [vmem:[#allocation2 + $0x14] sm:$0xf]
    %v63 = vld [vmem:[#allocation2 + $0x18] sm:$0xf]
    %v64 = vld [vmem:[#allocation2 + $0x1c] sm:$0xf]
    %v65 = vld [vmem:[#allocation2 + $0x20] sm:$0xf]
    %v66 = vld [vmem:[#allocation2 + $0x24] sm:$0xf]
    %v67 = vld [vmem:[#allocation2 + $0x28] sm:$0xf]
    %v68 = vld [vmem:[#allocation2 + $0x2c] sm:$0xf]
    %v69 = vld [vmem:[#allocation2 + $0x30] sm:$0xf]
    %v70 = vld [vmem:[#allocation2 + $0x34] sm:$0xf]
    %v71 = vld [vmem:[#allocation2 + $0x38] sm:$0xf]
    %v72 = vld [vmem:[#allocation2 + $0x3c] sm:$0xf]
    %v73 = vld [vmem:[%s2] sm:$0x1]
    %v75 = vlaneseq
    %v76 = vshrl.u32 %v75, 7
    %v77 = vsub.s32 0, %v76
    %v78 = vrot.slane %v73, %v77
    %v82 = vunpack.c.l.b16 %v55
    %v83 = vunpack.c.l.b16 %v56
    %v84 = vpack.c.b16 %v83, %v82
    %v102 = vunpack.c.l.b16 %v57
    %v103 = vunpack.c.l.b16 %v58
    %v104 = vunpack.c.l.b16 %v59
    %v105 = vunpack.c.l.b16 %v60
    %v106 = vunpack.c.l.b16 %v61
    %v107 = vunpack.c.l.b16 %v62
    %v108 = vunpack.c.l.b16 %v63
    %v109 = vunpack.c.l.b16 %v64
    %v110 = vunpack.c.l.b16 %v65
    %v111 = vunpack.c.l.b16 %v66
    %v112 = vunpack.c.l.b16 %v67
    %v113 = vunpack.c.l.b16 %v68
    %v114 = vunpack.c.l.b16 %v69
    %v115 = vunpack.c.l.b16 %v70
    %v116 = vunpack.c.l.b16 %v71
    %v117 = vunpack.c.l.b16 %v72
    %v118 = vpack.c.b16 %v103, %v102
    %v119 = vpack.c.b16 %v105, %v104
    %v120 = vpack.c.b16 %v107, %v106
    %v121 = vpack.c.b16 %v109, %v108
    %v122 = vpack.c.b16 %v111, %v110
    %v123 = vpack.c.b16 %v113, %v112
    %v124 = vpack.c.b16 %v115, %v114
    %v125 = vpack.c.b16 %v117, %v116
    %134 = vmatprep.subr.bf16.mxu0 0
    %135 = vmatpush1.bf16.msra.mxu0 %v125
    %136 = vmatprep.subr.bf16.mxu0 0
    %137 = vmatpush1.bf16.msra.mxu0 %v124
    %138 = vmatprep.subr.bf16.mxu0 0
    %139 = vmatpush1.bf16.msra.mxu0 %v123
    %140 = vmatprep.subr.bf16.mxu0 0
    %141 = vmatpush1.bf16.msra.mxu0 %v122
    %142 = vmatprep.subr.bf16.mxu0 0
    %143 = vmatpush1.bf16.msra.mxu0 %v121
    %144 = vmatprep.subr.bf16.mxu0 0
    %145 = vmatpush1.bf16.msra.mxu0 %v120
    %146 = vmatprep.subr.bf16.mxu0 0
    %147 = vmatpush1.bf16.msra.mxu0 %v119
    %148 = vmatprep.subr.bf16.mxu0 0
    %149 = vmatpush1.bf16.msra.mxu0 %v118
    %150 = vmatprep.subr.bf16.mxu0 0
    %151 = vmatpush2.bf16.msra.mxu0 0
    %152 = vmatprep.subr.bf16.mxu0 0
    %153 = vmatpush2.bf16.msra.mxu0 0
    %154 = vmatprep.subr.bf16.mxu0 0
    %155 = vmatpush2.bf16.msra.mxu0 0
    %156 = vmatprep.subr.bf16.mxu0 0
    %157 = vmatpush2.bf16.msra.mxu0 0
    %158 = vmatprep.subr.bf16.mxu0 0
    %159 = vmatpush2.bf16.msra.mxu0 0
    %160 = vmatprep.subr.bf16.mxu0 0
    %161 = vmatpush2.bf16.msra.mxu0 0
    %162 = vmatprep.subr.bf16.mxu0 0
    %163 = vmatpush2.bf16.msra.mxu0 0
    %164 = vmatprep.subr.bf16.mxu0 0
    %165 = vmatpush2.bf16.msra.mxu0 0
    %166 = vmatprep.mubr.bf16.mxu0 0
    %167 = vmatmul.mubr.bf16.gmra.mxu0 %v84
    %v168 = vpop.f32.mrf.mxu0
    %v169 = vadd.f32 %v78, %v168
    %v170 = vpop.f32.mrf.mxu0
    %v171 = vpop.f32.mrf.mxu0
    %v172 = vadd.f32 %v78, %v171
    %v173 = vpop.f32.mrf.mxu0
    %174 = vdwg.mxu0
    %v175 = vmul.f32 %v169, 0.5
    %v176 = vmul.f32 %v172, 0.5
    %v177 = vmul.f32 %v169, 0.70710677
    %v178 = vmul.f32 %v172, 0.70710677
    %v179 = verf.f32.pop %v177
    %v180 = verf.f32.pop %v178
    %v181 = vadd.f32 %v179, 1.0
    %v182 = vadd.f32 %v180, 1.0
    %v183 = vmul.f32 %v175, %v181
    %v184 = vmul.f32 %v176, %v182
    %v185 = vpack.c.bf16 %v184, %v183
    %v186 = vld [vmem:[#allocation4] sm:$0xf]
    %v187 = vld [vmem:[#allocation4 + $0x4] sm:$0xf]
    %v188 = vld [vmem:[#allocation4 + $0x8] sm:$0xf]
    %v189 = vld [vmem:[#allocation4 + $0xc] sm:$0xf]
    %v190 = vld [vmem:[#allocation4 + $0x10] sm:$0xf]
    %v191 = vld [vmem:[#allocation4 + $0x14] sm:$0xf]
    %v192 = vld [vmem:[#allocation4 + $0x18] sm:$0xf]
    %v193 = vld [vmem:[#allocation4 + $0x1c] sm:$0xf]
    %v194 = vld [vmem:[#allocation4 + $0x20] sm:$0xf]
    %v195 = vld [vmem:[#allocation4 + $0x24] sm:$0xf]
    %v196 = vld [vmem:[#allocation4 + $0x28] sm:$0xf]
    %v197 = vld [vmem:[#allocation4 + $0x2c] sm:$0xf]
    %v198 = vld [vmem:[#allocation4 + $0x30] sm:$0xf]
    %v199 = vld [vmem:[#allocation4 + $0x34] sm:$0xf]
    %v200 = vld [vmem:[#allocation4 + $0x38] sm:$0xf]
    %v201 = vld [vmem:[#allocation4 + $0x3c] sm:$0xf]
    %v202 = vld [vmem:[%s4] sm:$0x1]
    %v204 = vlaneseq
    %v205 = vshrl.u32 %v204, 7
    %v206 = vsub.s32 0, %v205
    %v207 = vrot.slane %v202, %v206
    %v225 = vunpack.c.l.b16 %v186
    %v226 = vunpack.c.l.b16 %v187
    %v227 = vunpack.c.l.b16 %v188
    %v228 = vunpack.c.l.b16 %v189
    %v229 = vunpack.c.l.b16 %v190
    %v230 = vunpack.c.l.b16 %v191
    %v231 = vunpack.c.l.b16 %v192
    %v232 = vunpack.c.l.b16 %v193
    %v233 = vunpack.c.l.b16 %v194
    %v234 = vunpack.c.l.b16 %v195
    %v235 = vunpack.c.l.b16 %v196
    %v236 = vunpack.c.l.b16 %v197
    %v237 = vunpack.c.l.b16 %v198
    %v238 = vunpack.c.l.b16 %v199
    %v239 = vunpack.c.l.b16 %v200
    %v240 = vunpack.c.l.b16 %v201
    %v241 = vpack.c.b16 %v226, %v225
    %v242 = vpack.c.b16 %v228, %v227
    %v243 = vpack.c.b16 %v230, %v229
    %v244 = vpack.c.b16 %v232, %v231
    %v245 = vpack.c.b16 %v234, %v233
    %v246 = vpack.c.b16 %v236, %v235
    %v247 = vpack.c.b16 %v238, %v237
    %v248 = vpack.c.b16 %v240, %v239
    %257 = vmatprep.subr.bf16.mxu0 0
    %258 = vmatpush1.bf16.msra.mxu0 %v248
    %259 = vmatprep.subr.bf16.mxu0 0
    %260 = vmatpush1.bf16.msra.mxu0 %v247
    %261 = vmatprep.subr.bf16.mxu0 0
    %262 = vmatpush1.bf16.msra.mxu0 %v246
    %263 = vmatprep.subr.bf16.mxu0 0
    %264 = vmatpush1.bf16.msra.mxu0 %v245
    %265 = vmatprep.subr.bf16.mxu0 0
    %266 = vmatpush1.bf16.msra.mxu0 %v244
    %267 = vmatprep.subr.bf16.mxu0 0
    %268 = vmatpush1.bf16.msra.mxu0 %v243
    %269 = vmatprep.subr.bf16.mxu0 0
    %270 = vmatpush1.bf16.msra.mxu0 %v242
    %271 = vmatprep.subr.bf16.mxu0 0
    %272 = vmatpush1.bf16.msra.mxu0 %v241
    %273 = vmatprep.subr.bf16.mxu0 0
    %274 = vmatpush2.bf16.msra.mxu0 0
    %275 = vmatprep.subr.bf16.mxu0 0
    %276 = vmatpush2.bf16.msra.mxu0 0
    %277 = vmatprep.subr.bf16.mxu0 0
    %278 = vmatpush2.bf16.msra.mxu0 0
    %279 = vmatprep.subr.bf16.mxu0 0
    %280 = vmatpush2.bf16.msra.mxu0 0
    %281 = vmatprep.subr.bf16.mxu0 0
    %282 = vmatpush2.bf16.msra.mxu0 0
    %283 = vmatprep.subr.bf16.mxu0 0
    %284 = vmatpush2.bf16.msra.mxu0 0
    %285 = vmatprep.subr.bf16.mxu0 0
    %286 = vmatpush2.bf16.msra.mxu0 0
    %287 = vmatprep.subr.bf16.mxu0 0
    %288 = vmatpush2.bf16.msra.mxu0 0
    %289 = vmatprep.mubr.bf16.mxu0 0
    %290 = vmatmul.mubr.bf16.gmra.mxu0 %v185
    %v291 = vpop.f32.mrf.mxu0
    %v292 = vadd.f32 %v207, %v291
    %v293 = vpop.f32.mrf.mxu0
    %v294 = vpop.f32.mrf.mxu0
    %v295 = vadd.f32 %v207, %v294
    %v296 = vpop.f32.mrf.mxu0
    %297 = vdwg.mxu0
    %v298 = vld [vmem:[%s5] sm:$0x1]
    %v299 = vld [vmem:[%s6] sm:$0x1]
    %v300 = vlaneseq
    %v301 = vand.u32 %v300, 127
    %vm302 = vcmp.lt.s32.totalorder %v301, 32
    %v303 = vsel %vm302, 1, 0
    %v304 = vcvt.s32.f32 %v303
    %v305 = vmul.f32 %v292, %v304
    %v306 = vmul.f32 %v295, %v304
    %307 = vadd.xlane.f32.xlu0 %v305
    %v308 = vpop.xlane.xlu0 %307
    %309 = vadd.xlane.f32.xlu0 %v306
    %v310 = vpop.xlane.xlu0 %309
    %v311 = vmul.f32 %v308, 0.03125
    %v312 = vmul.f32 %v310, 0.03125
    %v313 = vsub.f32 %v292, %v311
    %v314 = vsub.f32 %v295, %v312
    %v315 = vmul.f32 %v313, %v304
    %v316 = vmul.f32 %v314, %v304
    %v317 = vmul.f32 %v315, %v315
    %v318 = vmul.f32 %v316, %v316
    %319 = vadd.xlane.f32.xlu0 %v317
    %v320 = vpop.xlane.xlu0 %319
    %321 = vadd.xlane.f32.xlu0 %v318
    %v322 = vpop.xlane.xlu0 %321
    %v323 = vmul.f32 %v320, 0.03125
    %v324 = vmul.f32 %v322, 0.03125
    %v325 = vadd.f32 %v323, 1e-05
    %v326 = vadd.f32 %v324, 1e-05
    %v327 = vrsqrt.pop %v325
    %v328 = vrsqrt.pop %v326
    %v329 = vmul.f32 %v313, %v327
    %v330 = vmul.f32 %v314, %v328
    %v332 = vlaneseq
    %v333 = vshrl.u32 %v332, 7
    %v334 = vsub.s32 0, %v333
    %v335 = vrot.slane %v298, %v334
    %v337 = vmul.f32 %v329, %v335
    %v338 = vmul.f32 %v330, %v335
    %v340 = vlaneseq
    %v341 = vshrl.u32 %v340, 7
    %v342 = vsub.s32 0, %v341
    %v343 = vrot.slane %v299, %v342
    %v345 = vadd.f32 %v337, %v343
    %v346 = vadd.f32 %v338, %v343
    %347 = vst [vmem:[%s7] sm:$0xff] %v345
    %348 = vst [vmem:[%s7 + $0x8] sm:$0xff] %v346
    // Predicated region
    $region38: #{mlp_forward.1} parent=1 // pred_check
      _
    $region39: #{mlp_forward.1} parent=1 // pred_check_branch
      %350 = sbr.rel (0) target = $region41
    $region40: #{mlp_forward.1} parent=1 // pred_region
      _
    $region41: #{mlp_forward.1} parent=1 // pred_fallthru
      _
    // Predicated region
    $region42: #{mlp_forward.1} parent=1 // pred_check
      _
    $region43: #{mlp_forward.1} parent=1 // pred_check_branch
      %352 = sbr.rel (0) target = $region45
    $region44: #{mlp_forward.1} parent=1 // pred_region
      _
    $region45: #{mlp_forward.1} parent=1 // pred_fallthru
      _
    %353 = vsyncpa [#allocation3], 1
    %354 = vsyncpa [#allocation5], 1

</llo_original>
